<compile_context>
chip_gen: v5e
topology: v5e:2x2
jax: 0.10.0
libtpu: 0.0.40
codegen_flags: <defaults>
</compile_context>

<pallas_src>
import functools
import math

import jax
import jax.numpy as jnp
from jax.experimental import pallas as pl
from jax.experimental.pallas import tpu as pltpu


def _layernorm_kernel(x_ref, w_ref, b_ref, o_ref, *, eps):
    # x_ref: (BN, D) block of rows; w_ref/b_ref: (1, D); o_ref: (BN, D)
    x = x_ref[...].astype(jnp.float32)
    d = x.shape[-1]
    # Per-row (per-sample) statistics; two-pass form for numerical stability.
    mean = jnp.sum(x, axis=-1, keepdims=True) * (1.0 / d)
    xc = x - mean
    var = jnp.sum(xc * xc, axis=-1, keepdims=True) * (1.0 / d)
    inv = jax.lax.rsqrt(var + eps)
    w = w_ref[...].astype(jnp.float32)          # (1, D), VPU-broadcast over rows
    b = b_ref[...].astype(jnp.float32)          # (1, D)
    o_ref[...] = (xc * inv * w + b).astype(o_ref.dtype)


def _pick_block_rows(n_rows, row_bytes, target_bytes=2 * 1024 * 1024):
    """Largest legal row tile: either the full N (full-extent block is always
    legal), or a multiple of 8 rows whose block stays around `target_bytes`
    (fits default scoped VMEM with double-buffered input + output)."""
    target_rows = max(1, target_bytes // max(1, row_bytes))
    if n_rows <= target_rows:
        return n_rows
    return max(8, (min(target_rows, n_rows) // 8) * 8)


def layer_norm_pallas(x, weight, bias, idx, eps=1e-5):
    """x: (N, A, C); weight/bias: (A, T, C); idx: static Python int along T."""
    N = x.shape[0]
    norm_shape = x.shape[1:]
    D = int(math.prod(norm_shape))

    # Lane-dense layout: flatten normalized dims into the last axis.
    x2 = x.reshape(N, D)
    # Parameter slicing is glue (idx is a static int); keep 2-D for TPU layout.
    # TODO(synk): if idx ever becomes a traced value, switch to scalar prefetch
    # instead of this wrapper-side slice.
    w = weight[:, idx, :].reshape(1, D)
    b = bias[:, idx, :].reshape(1, D)

    BN = _pick_block_rows(N, D * x.dtype.itemsize)
    grid = (pl.cdiv(N, BN),)

    kernel = functools.partial(_layernorm_kernel, eps=eps)
    out = pl.pallas_call(
        kernel,
        out_shape=jax.ShapeDtypeStruct((N, D), x.dtype),
        grid_spec=pltpu.PrefetchScalarGridSpec(
            num_scalar_prefetch=0,
            grid=grid,
            in_specs=[
                pl.BlockSpec((BN, D), lambda i: (i, 0)),
                pl.BlockSpec((1, D), lambda i: (0, 0)),   # grid-invariant params
                pl.BlockSpec((1, D), lambda i: (0, 0)),
            ],
            out_specs=pl.BlockSpec((BN, D), lambda i: (i, 0)),
        ),
        compiler_params=pltpu.CompilerParams(
            dimension_semantics=("parallel",),            # shard N across TCs (v7x)
            vmem_limit_bytes=32 * 1024 * 1024,
        ),
    )(x2, w, b)
    return out.reshape(x.shape)


def layer_norm_ref(x, weight, bias, idx, eps=1e-5):
    w = weight[:, idx, :][None]
    b = bias[:, idx, :][None]
    xf = x.astype(jnp.float32)
    mean = jnp.mean(xf, axis=(1, 2), keepdims=True)
    var = jnp.mean((xf - mean) ** 2, axis=(1, 2), keepdims=True)
    return ((xf - mean) * jax.lax.rsqrt(var + eps) * w + b).astype(x.dtype)


if __name__ == "__main__":
    key = jax.random.PRNGKey(0)
    N, A, T, C = 2, 4, 8, 32     # input (N, A, C); params (A, T, C); A*C = 128 lanes
    eps = 1e-5
    idx = 3

    kx, kw, kb = jax.random.split(key, 3)
    x = jax.random.normal(kx, (N, A, C), dtype=jnp.float32)
    # Deterministic but non-trivial affine params (exercises the w/b path;
    # reset_parameters' ones/zeros is a special case of this).
    weight = 1.0 + 0.1 * jax.random.normal(kw, (A, T, C), dtype=jnp.float32)
    bias = 0.1 * jax.random.normal(kb, (A, T, C), dtype=jnp.float32)

    out = layer_norm_pallas(x, weight, bias, idx, eps=eps)
    out = jax.block_until_ready(out)

    ref = layer_norm_ref(x, weight, bias, idx, eps=eps)
    assert out.shape == x.shape and out.dtype == x.dtype
    assert jnp.allclose(out, ref, atol=1e-5, rtol=1e-5), "mismatch vs reference"

    print("KERNEL_OK")
</pallas_src>

<mosaic_0001>
module attributes {stable_mosaic.version = 11 : i64} {
  func.func @_layernorm_kernel(%arg0: i32, %arg1: memref<2x128xf32, #tpu.memory_space<vmem>>, %arg2: memref<1x128xf32, #tpu.memory_space<vmem>>, %arg3: memref<1x128xf32, #tpu.memory_space<vmem>>, %arg4: memref<2x128xf32, #tpu.memory_space<vmem>>) attributes {dimension_semantics = [#tpu.dimension_semantics<parallel>], iteration_bounds = array<i64: 1>, scalar_prefetch = 0 : i64, scratch_operands = 0 : i64, tpu.core_type = #tpu.core_type<tc>, window_params = [{transform_indices = @transform_0, window_bounds = array<i64: 2, 128>}, {pipeline_mode = #tpu.pipeline_mode<synchronous>, transform_indices = @transform_1, window_bounds = array<i64: 1, 128>}, {pipeline_mode = #tpu.pipeline_mode<synchronous>, transform_indices = @transform_2, window_bounds = array<i64: 1, 128>}, {transform_indices = @transform_3, window_bounds = array<i64: 2, 128>}]} {
    %c0 = arith.constant 0 : index
    %c0_0 = arith.constant 0 : index
    %0 = vector.load %arg1[%c0, %c0_0] : memref<2x128xf32, #tpu.memory_space<vmem>>, vector<2x128xf32>
    %cst = arith.constant dense<0.000000e+00> : vector<2xf32>
    %1 = vector.multi_reduction <add>, %0, %cst [1] : vector<2x128xf32> to vector<2xf32>
    %2 = vector.shape_cast %1 : vector<2xf32> to vector<2x1xf32>
    %cst_1 = arith.constant 7.812500e-03 : f32
    %3 = vector.broadcast %cst_1 : f32 to vector<2x1xf32>
    %4 = arith.mulf %2, %3 : vector<2x1xf32>
    %5 = vector.broadcast %4 : vector<2x1xf32> to vector<2x128xf32>
    %6 = arith.subf %0, %5 : vector<2x128xf32>
    %7 = arith.mulf %6, %6 : vector<2x128xf32>
    %cst_2 = arith.constant dense<0.000000e+00> : vector<2xf32>
    %8 = vector.multi_reduction <add>, %7, %cst_2 [1] : vector<2x128xf32> to vector<2xf32>
    %9 = vector.shape_cast %8 : vector<2xf32> to vector<2x1xf32>
    %cst_3 = arith.constant 7.812500e-03 : f32
    %10 = vector.broadcast %cst_3 : f32 to vector<2x1xf32>
    %11 = arith.mulf %9, %10 : vector<2x1xf32>
    %cst_4 = arith.constant 9.99999974E-6 : f32
    %12 = vector.broadcast %cst_4 : f32 to vector<2x1xf32>
    %13 = arith.addf %11, %12 : vector<2x1xf32>
    %14 = math.rsqrt %13 : vector<2x1xf32>
    %c0_5 = arith.constant 0 : index
    %c0_6 = arith.constant 0 : index
    %15 = vector.load %arg2[%c0_5, %c0_6] : memref<1x128xf32, #tpu.memory_space<vmem>>, vector<1x128xf32>
    %c0_7 = arith.constant 0 : index
    %c0_8 = arith.constant 0 : index
    %16 = vector.load %arg3[%c0_7, %c0_8] : memref<1x128xf32, #tpu.memory_space<vmem>>, vector<1x128xf32>
    %17 = vector.broadcast %14 : vector<2x1xf32> to vector<2x128xf32>
    %18 = arith.mulf %6, %17 : vector<2x128xf32>
    %19 = vector.broadcast %15 : vector<1x128xf32> to vector<2x128xf32>
    %20 = arith.mulf %18, %19 : vector<2x128xf32>
    %21 = vector.broadcast %16 : vector<1x128xf32> to vector<2x128xf32>
    %22 = arith.addf %20, %21 : vector<2x128xf32>
    %c0_9 = arith.constant 0 : index
    %c0_10 = arith.constant 0 : index
    %23 = vector.load %arg4[%c0_9, %c0_10] : memref<2x128xf32, #tpu.memory_space<vmem>>, vector<2x128xf32>
    tpu.vector_store %arg4[%c0_9, %c0_10], %22 {strides = array<i32>} : memref<2x128xf32, #tpu.memory_space<vmem>>, vector<2x128xf32>,
    return
  }
  func.func @transform_0(%arg0: i32) -> (i32, i32) {
    %c0_i32 = arith.constant 0 : i32
    %c0_i32_0 = arith.constant 0 : i32
    return %arg0, %c0_i32 : i32, i32
  }
  func.func @transform_1(%arg0: i32) -> (i32, i32) {
    %c0_i32 = arith.constant 0 : i32
    %c0_i32_0 = arith.constant 0 : i32
    %c0_i32_1 = arith.constant 0 : i32
    return %c0_i32, %c0_i32_0 : i32, i32
  }
  func.func @transform_2(%arg0: i32) -> (i32, i32) {
    %c0_i32 = arith.constant 0 : i32
    %c0_i32_0 = arith.constant 0 : i32
    %c0_i32_1 = arith.constant 0 : i32
    return %c0_i32, %c0_i32_0 : i32, i32
  }
  func.func @transform_3(%arg0: i32) -> (i32, i32) {
    %c0_i32 = arith.constant 0 : i32
    %c0_i32_0 = arith.constant 0 : i32
    return %arg0, %c0_i32 : i32, i32
  }
}

</mosaic_0001>

<llo_original>
// kernel: tpu_custom_call.1
$region0: #{tpu_custom_call.1}
  #allocation0 [shape = 'u32[]', space=smem, size = 0x4, offset = 0x4, fixed_abs, tag = 'smem constant byte address 0x4 - core index']
  #allocation1 [shape = 'u32[72,128]{1,0:T(1,128)}', space=vmem, size = 0x9000, scoped, tag = 'internal scratch']
  %s0 = inlined_call_operand.hbm [shape: f32[2,128], index: 0, kind: input, shape index: {}]
  %s1 = inlined_call_operand.hbm [shape: f32[1,128], index: 1, kind: input, shape index: {}]
  %s2 = inlined_call_operand.vmem [shape: f32[1,128], index: 2, kind: input, shape index: {}]
  %s3 = inlined_call_operand.hbm [shape: f32[2,128], index: 3, kind: output, shape index: {}]
  %s4 = sld [smem:[#allocation0]]
  $region30: #{tpu_custom_call.1} parent=0
    _
  %s6 = ssub.s32 1, %s4
  %s7 = scalar_select 0, %s6, %s4
  $region1: #{tpu_custom_call.1} parent=0
    #allocation2 [shape = 'u8[1024]{0}', space=vmem, size = 0x400, scoped, tag = 'input window, operand 0, single buffered']
    #allocation3 [shape = 's32[1]{0}', space=sflag, size = 0x4, scoped, tag = 'scoped memory for tpu_custom_call.1']
    #allocation4 [shape = 's32[1]{0}', space=sflag, size = 0x4, scoped, tag = 'scoped memory for tpu_custom_call.1']
    #allocation5 [shape = 'u8[512]{0}', space=vmem, size = 0x400, scoped, tag = 'input window, operand 1, single buffered']
    #allocation6 [shape = 's32[1]{0}', space=sflag, size = 0x4, scoped, tag = 'scoped memory for tpu_custom_call.1']
    #allocation7 [shape = 'u8[1024]{0}', space=vmem, size = 0x400, scoped, tag = 'output window, operand 0, single buffered']
    %8 = vsyncpa [#allocation3], 0
    %9 = vsyncpa [#allocation6], 0
    %10 = vsyncpa [#allocation4], 0
    // Predicated region
    $region2: #{tpu_custom_call.1} parent=1 // pred_check
      _
    $region3: #{tpu_custom_call.1} parent=1 // pred_check_branch
      %12 = sbr.rel (0) target = $region5
    $region4: #{tpu_custom_call.1} parent=1 // pred_region
      %14 = vsyncadd [#allocation3], 0
      %s16 = sshll.u32 %s0, 4
      %s17 = int_to_ptr.hbm [resolvable:$true] %s16
      %s18 = sshll.u32 [#allocation2], 4
      %s19 = int_to_ptr.vmem [resolvable:$true] %s18
      %21 = dma.hbm_to_vmem [thread:$0]  %s17, 32, %s19, [#allocation3]
    $region5: #{tpu_custom_call.1} parent=1 // pred_fallthru
      _
    // Predicated region
    $region6: #{tpu_custom_call.1} parent=1 // pred_check
      _
    $region7: #{tpu_custom_call.1} parent=1 // pred_check_branch
      %23 = sbr.rel (0) target = $region9
    $region8: #{tpu_custom_call.1} parent=1 // pred_region
      %25 = vsyncadd [#allocation6], 0
      %s27 = sshll.u32 %s1, 4
      %s28 = int_to_ptr.hbm [resolvable:$true] %s27
      %s29 = sshll.u32 [#allocation5], 4
      %s30 = int_to_ptr.vmem [resolvable:$true] %s29
      %32 = dma.hbm_to_vmem [thread:$0]  %s28, 16, %s30, [#allocation6]
    $region9: #{tpu_custom_call.1} parent=1 // pred_fallthru
      _
    // Predicated region
    $region10: #{tpu_custom_call.1} parent=1 // pred_check
      _
    $region11: #{tpu_custom_call.1} parent=1 // pred_check_branch
      %34 = sbr.rel (0) target = $region13
    $region12: #{tpu_custom_call.1} parent=1 // pred_region
      _
    $region13: #{tpu_custom_call.1} parent=1 // pred_fallthru
      _
    // Predicated region
    $region14: #{tpu_custom_call.1} parent=1 // pred_check
      _
    $region15: #{tpu_custom_call.1} parent=1 // pred_check_branch
      %36 = sbr.rel (0) target = $region17
    $region16: #{tpu_custom_call.1} parent=1 // pred_region
      %38 = dma.done [#allocation3], 32
    $region17: #{tpu_custom_call.1} parent=1 // pred_fallthru
      _
    // Predicated region
    $region18: #{tpu_custom_call.1} parent=1 // pred_check
      _
    $region19: #{tpu_custom_call.1} parent=1 // pred_check_branch
      %40 = sbr.rel (0) target = $region21
    $region20: #{tpu_custom_call.1} parent=1 // pred_region
      %42 = dma.done [#allocation6], 16
    $region21: #{tpu_custom_call.1} parent=1 // pred_fallthru
      _
    %v43 = vld [vmem:[#allocation2] sm:$0x3]
    %vm44 = vcmask 1041408
    %v45 = vsel %vm44, %v43, 0.0
    %46 = vadd.xlane.f32.xlu0 %v45
    %v47 = vpop.xlane.xlu0 %46
    %v48 = vmul.f32 %v47, 0.0078125
    %v49 = vsub.f32 %v43, %v48
    %v50 = vmul.f32 %v49, %v49
    %v51 = vsel %vm44, %v50, 0.0
    %52 = vadd.xlane.f32.xlu0 %v51
    %v53 = vpop.xlane.xlu0 %52
    %v54 = vmul.f32 %v53, 0.0078125
    %v55 = vadd.f32 %v54, 1e-05
    %v56 = vrsqrt.pop %v55
    %v57 = vmul.f32 %v56, %v55
    %v58 = vmul.f32 %v57, %v56
    %v59 = vmul.f32 0.5, %v58
    %v60 = vsub.f32 1.5, %v59
    %v61 = vmul.f32 %v56, %v60
    %vm62 = vweird.f32 %v55
    %vm63 = vweird.f32 %v56
    %vm64 = vmor %vm62, %vm63
    %v65 = vsel %vm64, %v56, %v61
    %v66 = vld [vmem:[#allocation5] sm:$0x1]
    %v67 = vld [vmem:[%s2] sm:$0x1]
    %v68 = vmul.f32 %v49, %v65
    %v70 = vperm.slane %v66, 0
    %v72 = vmul.f32 %v68, %v70
    %v74 = vperm.slane %v67, 0
    %v76 = vadd.f32 %v72, %v74
    %77 = vst [vmem:[#allocation7] sm:$0x3] %v76
    // Predicated region
    $region22: #{tpu_custom_call.1} parent=1 // pred_check
      _
    $region23: #{tpu_custom_call.1} parent=1 // pred_check_branch
      %79 = sbr.rel (0) target = $region25
    $region24: #{tpu_custom_call.1} parent=1 // pred_region
      %81 = vsyncadd [#allocation4], 0
      %s83 = sshll.u32 [#allocation7], 4
      %s84 = int_to_ptr.vmem [resolvable:$true] %s83
      %s85 = sshll.u32 %s3, 4
      %s86 = int_to_ptr.hbm [resolvable:$true] %s85
      %88 = dma.vmem_to_hbm [thread:$0]  %s84, 32, %s86, [#allocation4]
    $region25: #{tpu_custom_call.1} parent=1 // pred_fallthru
      _
    // Predicated region
    $region26: #{tpu_custom_call.1} parent=1 // pred_check
      _
    $region27: #{tpu_custom_call.1} parent=1 // pred_check_branch
      %90 = sbr.rel (0) target = $region29
    $region28: #{tpu_custom_call.1} parent=1 // pred_region
      %92 = dma.done [#allocation4], 32
    $region29: #{tpu_custom_call.1} parent=1 // pred_fallthru
      _
    %93 = vsyncpa [#allocation3], 1
    %94 = vsyncpa [#allocation6], 1
    %95 = vsyncpa [#allocation4], 1

</llo_original>
